<compile_context>
chip_gen: v5e
topology: v5e:2x2
jax: 0.10.0
libtpu: 0.0.40
codegen_flags: <defaults>
</compile_context>

<pallas_src>
import functools

import jax
import jax.numpy as jnp
from jax.experimental import pallas as pl
from jax.experimental.pallas import tpu as pltpu


def _silu(z):
    return z * jax.nn.sigmoid(z)


def _round_up(a, b):
    return (a + b - 1) // b * b


def _mpnn_lspe_kernel(send_ref, rec_ref, feats_ref,
                      w_e1s_ref, w_e1r_ref, w_e1d_ref, b_e1_ref,
                      w_e2_ref, b_e2_ref,
                      w_n1f_ref, w_n1a_ref, b_n1_ref,
                      w_n2_ref, b_n2_ref,
                      out_ref, aggr_ref):
    blk = pl.program_id(0)
    nblk = pl.num_programs(0)
    TE = send_ref.shape[0]
    Np, F = feats_ref.shape
    H2 = out_ref.shape[1]          # 2 * H  (packed [update | update_pe])
    H = H2 // 2
    f32 = jnp.float32
    bf16 = jnp.bfloat16
    dot = functools.partial(jnp.dot, preferred_element_type=f32)

    @pl.when(blk == 0)
    def _():
        aggr_ref[...] = jnp.zeros_like(aggr_ref)

    # ---- per-edge-block one-hots (exact in bf16) --------------------------
    send = send_ref[...]                                           # [TE, 1] i32
    rec = rec_ref[...]                                             # [TE, 1] i32
    node_ids = jax.lax.broadcasted_iota(jnp.int32, (TE, Np), 1)
    g_send = (send == node_ids).astype(bf16)                       # [TE, Np]
    g_rec = (rec == node_ids).astype(bf16)                         # [TE, Np]

    # ---- fused gathers: one wide MXU matmul per one-hot -------------------
    feats = feats_ref[...]                                         # [Np, F] bf16
    send_f = dot(g_send, feats)                                    # [TE, F] f32
    rec_f = dot(g_rec, feats)                                      # [TE, F] f32

    # distance from the pos columns (last 3 lanes of the slab), f32 math
    diff = send_f[:, 2 * H:F] - rec_f[:, 2 * H:F]
    dist = jnp.sqrt(jnp.sum(diff * diff, axis=-1, keepdims=True))  # [TE, 1]

    # ---- fused first layer of message_mlp + pos_mlp (depth 2H+3, width 2H)
    pre = (dot(send_f.astype(bf16), w_e1s_ref[...])
           + dot(rec_f.astype(bf16), w_e1r_ref[...])
           + dist * w_e1d_ref[...]
           + b_e1_ref[...])                                        # [TE, 2H] f32
    lane = jax.lax.broadcasted_iota(jnp.int32, pre.shape, 1)
    act = jnp.where(lane < H, _silu(pre), jnp.tanh(pre))

    # ---- fused second layer (block-diagonal): [message | pos_msg] ---------
    pre2 = dot(act.astype(bf16), w_e2_ref[...]) + b_e2_ref[...]
    msg = jnp.where(lane < H, _silu(pre2), jnp.tanh(pre2))         # [TE, 2H]

    # ---- scatter-add over receiving node: aggr += g_rec^T @ msg -----------
    aggr_ref[...] += jax.lax.dot_general(
        g_rec, msg.astype(bf16), (((0,), (0,)), ((), ())),
        preferred_element_type=f32)                                # [Np, 2H]

    # ---- node phase on the last edge block --------------------------------
    @pl.when(blk == nblk - 1)
    def _():
        aggr = aggr_ref[...]                                       # [Np, 2H] f32
        pre_n = (dot(feats, w_n1f_ref[...])
                 + dot(aggr.astype(bf16), w_n1a_ref[...])
                 + b_n1_ref[...])                                  # [Np, 2H]
        lane_n = jax.lax.broadcasted_iota(jnp.int32, pre_n.shape, 1)
        uq = jnp.where(lane_n < H, _silu(pre_n), jnp.tanh(pre_n))
        out_n = dot(uq.astype(bf16), w_n2_ref[...]) + b_n2_ref[...]
        # update has no final activation; update_pe gets tanh
        out_ref[...] = jnp.where(lane_n < H, out_n,
                                 jnp.tanh(out_n)).astype(out_ref.dtype)


def mpnn_lspe_layer(x, pe, pos, edge_index, params, *, edge_tile=512):
    """Pallas forward of MPNNLSPELayer. Returns (update, update_pe)."""
    N, H = x.shape
    P = pos.shape[1]
    E = edge_index.shape[1]
    F = 2 * H + P
    f32, bf16 = jnp.float32, jnp.bfloat16

    Np = _round_up(N, 8)
    TE = min(edge_tile, _round_up(E, 8))
    Ep = _round_up(E, TE)
    nblk = Ep // TE

    # ---- layout plumbing (outside the kernel) -----------------------------
    # node-feature slab [x | pe | pos], row-padded, bf16 for the MXU
    feats = jnp.concatenate([x, pe, pos], axis=1)
    feats = jnp.pad(feats, ((0, Np - N), (0, 0))).astype(bf16)

    # edge indices as [Ep, 1] int32; padded edges use -1 (match no node ->
    # gathered features 0 and zero scatter contribution)
    send = jnp.pad(edge_index[0].astype(jnp.int32), (0, Ep - E),
                   constant_values=-1).reshape(Ep, 1)
    rec = jnp.pad(edge_index[1].astype(jnp.int32), (0, Ep - E),
                  constant_values=-1).reshape(Ep, 1)

    # ---- fused weight slabs ------------------------------------------------
    wm1, wp1 = params["wm1"], params["wp1"]
    wu1, wq1 = params["wu1"], params["wq1"]
    z_h = jnp.zeros((H, H), f32)
    z_p = jnp.zeros((P, 2 * H), f32)

    # edge phase, layer 1: [TE, F] x [F, 2H] (two of them) + dist row + bias
    w_e1s = jnp.concatenate([
        jnp.concatenate([wm1[0:H], z_h], axis=1),
        jnp.concatenate([wm1[H:2 * H], wp1[0:H]], axis=1),
        z_p], axis=0).astype(bf16)                                 # [F, 2H]
    w_e1r = jnp.concatenate([
        jnp.concatenate([wm1[2 * H:3 * H], z_h], axis=1),
        jnp.concatenate([wm1[3 * H:4 * H], wp1[H:2 * H]], axis=1),
        z_p], axis=0).astype(bf16)                                 # [F, 2H]
    w_e1d = jnp.concatenate([wm1[4 * H:4 * H + 1],
                             wp1[2 * H:2 * H + 1]], axis=1)        # [1, 2H] f32
    b_e1 = jnp.concatenate([params["bm1"], params["bp1"]], axis=1)

    # edge phase, layer 2: block-diag [2H, 2H]
    w_e2 = jnp.concatenate([
        jnp.concatenate([params["wm2"], z_h], axis=1),
        jnp.concatenate([z_h, params["wp2"]], axis=1)], axis=0).astype(bf16)
    b_e2 = jnp.concatenate([params["bm2"], params["bp2"]], axis=1)

    # node phase, layer 1: from feats and from [aggr | pos_aggr]
    w_n1f = jnp.concatenate([
        jnp.concatenate([wu1[0:H], z_h], axis=1),
        jnp.concatenate([wu1[H:2 * H], wq1[0:H]], axis=1),
        z_p], axis=0).astype(bf16)                                 # [F, 2H]
    w_n1a = jnp.concatenate([
        jnp.concatenate([wu1[2 * H:3 * H], z_h], axis=1),
        jnp.concatenate([z_h, wq1[H:2 * H]], axis=1)], axis=0).astype(bf16)
    b_n1 = jnp.concatenate([params["bu1"], params["bq1"]], axis=1)

    # node phase, layer 2: block-diag [2H, 2H]
    w_n2 = jnp.concatenate([
        jnp.concatenate([params["wu2"], z_h], axis=1),
        jnp.concatenate([z_h, params["wq2"]], axis=1)], axis=0).astype(bf16)
    b_n2 = jnp.concatenate([params["bu2"], params["bq2"]], axis=1)

    # ---- specs -------------------------------------------------------------
    edge_spec = pl.BlockSpec((TE, 1), lambda i: (i, 0))

    def full(arr):
        shp = arr.shape
        return pl.BlockSpec(shp, lambda i: (0,) * len(shp))

    consts = [feats, w_e1s, w_e1r, w_e1d, b_e1, w_e2, b_e2,
              w_n1f, w_n1a, b_n1, w_n2, b_n2]
    in_specs = [edge_spec, edge_spec] + [full(a) for a in consts]
    out_spec = pl.BlockSpec((Np, 2 * H), lambda i: (0, 0))

    packed = pl.pallas_call(
        _mpnn_lspe_kernel,
        out_shape=jax.ShapeDtypeStruct((Np, 2 * H), x.dtype),
        grid=(nblk,),
        in_specs=in_specs,
        out_specs=out_spec,
        scratch_shapes=[pltpu.VMEM((Np, 2 * H), jnp.float32)],
        compiler_params=pltpu.CompilerParams(
            dimension_semantics=("arbitrary",),
            vmem_limit_bytes=48 * 1024 * 1024),
    )(send, rec, *consts)

    return packed[:N, :H], packed[:N, H:2 * H]


# ----------------------------- parameter init -----------------------------
def init_params(key, num_hidden):
    """Deterministic params; Linear(in,out) stored as W:[in,out], b:[1,out]."""
    H = num_hidden
    layer_dims = {
        "wm1": (4 * H + 1, H), "wm2": (H, H),     # message_mlp
        "wp1": (2 * H + 1, H), "wp2": (H, H),     # pos_mlp
        "wu1": (3 * H, H),     "wu2": (H, H),     # update_mlp
        "wq1": (2 * H, H),     "wq2": (H, H),     # update_mlp_pos
    }
    params = {}
    for name, (fan_in, fan_out) in layer_dims.items():
        key, kw, kb = jax.random.split(key, 3)
        bound = 1.0 / jnp.sqrt(float(fan_in))
        params[name] = jax.random.uniform(
            kw, (fan_in, fan_out), jnp.float32, -bound, bound)
        params["b" + name[1:]] = jax.random.uniform(
            kb, (1, fan_out), jnp.float32, -bound, bound)
    return params


# ------------------------- pure-JAX reference model ------------------------
def reference(x, pe, pos, edge_index, params):
    send, rec = edge_index[0], edge_index[1]
    lin = lambda z, w, b: z @ w + b
    state = jnp.concatenate([x[send], pe[send], x[rec], pe[rec]], axis=-1)
    pe_state = jnp.concatenate([pe[send], pe[rec]], axis=-1)
    dist = jnp.linalg.norm(pos[send] - pos[rec], axis=1, keepdims=True)
    state = jnp.concatenate([state, dist], axis=1)
    pe_state = jnp.concatenate([pe_state, dist], axis=1)

    h = jax.nn.silu(lin(state, params["wm1"], params["bm1"]))
    message = jax.nn.silu(lin(h, params["wm2"], params["bm2"]))
    p = jnp.tanh(lin(pe_state, params["wp1"], params["bp1"]))
    pos_msg = jnp.tanh(lin(p, params["wp2"], params["bp2"]))

    N, H = x.shape
    aggr = jnp.zeros((N, H), x.dtype).at[rec].add(message)
    u = jax.nn.silu(lin(jnp.concatenate([x, pe, aggr], axis=1),
                        params["wu1"], params["bu1"]))
    update = lin(u, params["wu2"], params["bu2"])
    pos_aggr = jnp.zeros((N, H), x.dtype).at[rec].add(pos_msg)
    q = jnp.tanh(lin(jnp.concatenate([pe, pos_aggr], axis=1),
                     params["wq1"], params["bq1"]))
    update_pe = jnp.tanh(lin(q, params["wq2"], params["bq2"]))
    return update, update_pe


if __name__ == "__main__":
    N, H, E, P = 8, 32, 16, 3
    key = jax.random.PRNGKey(0)
    k_x, k_pe, k_pos, k_send, k_rec, k_par = jax.random.split(key, 6)

    x = jax.random.normal(k_x, (N, H), jnp.float32)
    pe = jax.random.normal(k_pe, (N, H), jnp.float32)
    pos = jax.random.normal(k_pos, (N, P), jnp.float32)
    edge_index = jnp.stack([
        jax.random.randint(k_send, (E,), 0, N, jnp.int32),
        jax.random.randint(k_rec, (E,), 0, N, jnp.int32),
    ], axis=0)                                              # [2, E]
    params = init_params(k_par, H)

    update, update_pe = mpnn_lspe_layer(x, pe, pos, edge_index, params)
    jax.block_until_ready((update, update_pe))

    ref_update, ref_update_pe = reference(x, pe, pos, edge_index, params)
    # matmul operands run in bf16 (f32 accumulation), so use bf16 tolerances
    assert jnp.allclose(update, ref_update, atol=5e-2, rtol=5e-2)
    assert jnp.allclose(update_pe, ref_update_pe, atol=5e-2, rtol=5e-2)
    print("KERNEL_OK")
</pallas_src>

<mosaic_0001>
module attributes {stable_mosaic.version = 11 : i64} {
  func.func @_mpnn_lspe_kernel(%arg0: i32, %arg1: memref<16x1xi32, #tpu.memory_space<vmem>>, %arg2: memref<16x1xi32, #tpu.memory_space<vmem>>, %arg3: memref<8x67xbf16, #tpu.memory_space<vmem>>, %arg4: memref<67x64xbf16, #tpu.memory_space<vmem>>, %arg5: memref<67x64xbf16, #tpu.memory_space<vmem>>, %arg6: memref<1x64xf32, #tpu.memory_space<vmem>>, %arg7: memref<1x64xf32, #tpu.memory_space<vmem>>, %arg8: memref<64x64xbf16, #tpu.memory_space<vmem>>, %arg9: memref<1x64xf32, #tpu.memory_space<vmem>>, %arg10: memref<67x64xbf16, #tpu.memory_space<vmem>>, %arg11: memref<64x64xbf16, #tpu.memory_space<vmem>>, %arg12: memref<1x64xf32, #tpu.memory_space<vmem>>, %arg13: memref<64x64xbf16, #tpu.memory_space<vmem>>, %arg14: memref<1x64xf32, #tpu.memory_space<vmem>>, %arg15: memref<8x64xf32, #tpu.memory_space<vmem>>, %arg16: memref<8x64xf32, #tpu.memory_space<vmem>>) attributes {dimension_semantics = [#tpu.dimension_semantics<arbitrary>], iteration_bounds = array<i64: 1>, scalar_prefetch = 0 : i64, scratch_operands = 1 : i64, tpu.core_type = #tpu.core_type<tc>, window_params = [{transform_indices = @transform_0, window_bounds = array<i64: 16, 1>}, {transform_indices = @transform_1, window_bounds = array<i64: 16, 1>}, {pipeline_mode = #tpu.pipeline_mode<synchronous>, transform_indices = @transform_2, window_bounds = array<i64: 8, 67>}, {pipeline_mode = #tpu.pipeline_mode<synchronous>, transform_indices = @transform_3, window_bounds = array<i64: 67, 64>}, {pipeline_mode = #tpu.pipeline_mode<synchronous>, transform_indices = @transform_4, window_bounds = array<i64: 67, 64>}, {pipeline_mode = #tpu.pipeline_mode<synchronous>, transform_indices = @transform_5, window_bounds = array<i64: 1, 64>}, {pipeline_mode = #tpu.pipeline_mode<synchronous>, transform_indices = @transform_6, window_bounds = array<i64: 1, 64>}, {pipeline_mode = #tpu.pipeline_mode<synchronous>, transform_indices = @transform_7, window_bounds = array<i64: 64, 64>}, {pipeline_mode = #tpu.pipeline_mode<synchronous>, transform_indices = @transform_8, window_bounds = array<i64: 1, 64>}, {pipeline_mode = #tpu.pipeline_mode<synchronous>, transform_indices = @transform_9, window_bounds = array<i64: 67, 64>}, {pipeline_mode = #tpu.pipeline_mode<synchronous>, transform_indices = @transform_10, window_bounds = array<i64: 64, 64>}, {pipeline_mode = #tpu.pipeline_mode<synchronous>, transform_indices = @transform_11, window_bounds = array<i64: 1, 64>}, {pipeline_mode = #tpu.pipeline_mode<synchronous>, transform_indices = @transform_12, window_bounds = array<i64: 64, 64>}, {pipeline_mode = #tpu.pipeline_mode<synchronous>, transform_indices = @transform_13, window_bounds = array<i64: 1, 64>}, {pipeline_mode = #tpu.pipeline_mode<synchronous>, transform_indices = @transform_14, window_bounds = array<i64: 8, 64>}]} {
    %c0_i32 = arith.constant 0 : i32
    %0 = arith.cmpi eq, %arg0, %c0_i32 : i32
    %1 = arith.extui %0 : i1 to i32
    %c0_i32_0 = arith.constant 0 : i32
    %2 = arith.cmpi ne, %1, %c0_i32_0 : i32
    scf.if %2 {
      %cst_33 = arith.constant 0.000000e+00 : f32
      %76 = vector.broadcast %cst_33 : f32 to vector<8x64xf32>
      %c0_34 = arith.constant 0 : index
      %c0_35 = arith.constant 0 : index
      %77 = vector.load %arg16[%c0_34, %c0_35] : memref<8x64xf32, #tpu.memory_space<vmem>>, vector<8x64xf32>
      tpu.vector_store %arg16[%c0_34, %c0_35], %76 {strides = array<i32>} : memref<8x64xf32, #tpu.memory_space<vmem>>, vector<8x64xf32>,
    } else {
    }
    %c0 = arith.constant 0 : index
    %c0_1 = arith.constant 0 : index
    %3 = vector.load %arg1[%c0, %c0_1] : memref<16x1xi32, #tpu.memory_space<vmem>>, vector<16x1xi32>
    %c0_2 = arith.constant 0 : index
    %c0_3 = arith.constant 0 : index
    %4 = vector.load %arg2[%c0_2, %c0_3] : memref<16x1xi32, #tpu.memory_space<vmem>>, vector<16x1xi32>
    %5 = tpu.iota {dimensions = array<i32: 1>} : vector<16x8xi32>
    %6 = vector.broadcast %3 : vector<16x1xi32> to vector<16x8xi32>
    %7 = arith.cmpi eq, %6, %5 : vector<16x8xi32>
    %8 = arith.extui %7 : vector<16x8xi1> to vector<16x8xi32>
    %9 = arith.sitofp %8 : vector<16x8xi32> to vector<16x8xf32>
    %10 = arith.truncf %9 : vector<16x8xf32> to vector<16x8xbf16>
    %11 = vector.broadcast %4 : vector<16x1xi32> to vector<16x8xi32>
    %12 = arith.cmpi eq, %11, %5 : vector<16x8xi32>
    %13 = arith.extui %12 : vector<16x8xi1> to vector<16x8xi32>
    %14 = arith.sitofp %13 : vector<16x8xi32> to vector<16x8xf32>
    %15 = arith.truncf %14 : vector<16x8xf32> to vector<16x8xbf16>
    %c0_4 = arith.constant 0 : index
    %c0_5 = arith.constant 0 : index
    %16 = vector.load %arg3[%c0_4, %c0_5] : memref<8x67xbf16, #tpu.memory_space<vmem>>, vector<8x67xbf16>
    %cst = arith.constant dense<0.000000e+00> : vector<16x67xf32>
    %17 = tpu.matmul %10, %16, %cst {dimension_numbers = #tpu.dot_dimension_numbers<[1], [0], [0], [1], [0, 0, 1, 1], [], []>} : vector<16x8xbf16>, vector<8x67xbf16>, vector<16x67xf32> -> vector<16x67xf32>
    %cst_6 = arith.constant dense<0.000000e+00> : vector<16x67xf32>
    %18 = tpu.matmul %15, %16, %cst_6 {dimension_numbers = #tpu.dot_dimension_numbers<[1], [0], [0], [1], [0, 0, 1, 1], [], []>} : vector<16x8xbf16>, vector<8x67xbf16>, vector<16x67xf32> -> vector<16x67xf32>
    %19 = vector.extract_strided_slice %17 {offsets = [0, 64], sizes = [16, 3], strides = [1, 1]} : vector<16x67xf32> to vector<16x3xf32>
    %20 = vector.extract_strided_slice %18 {offsets = [0, 64], sizes = [16, 3], strides = [1, 1]} : vector<16x67xf32> to vector<16x3xf32>
    %21 = arith.subf %19, %20 : vector<16x3xf32>
    %22 = arith.mulf %21, %21 : vector<16x3xf32>
    %cst_7 = arith.constant dense<0.000000e+00> : vector<16xf32>
    %23 = vector.multi_reduction <add>, %22, %cst_7 [1] : vector<16x3xf32> to vector<16xf32>
    %24 = vector.shape_cast %23 : vector<16xf32> to vector<16x1xf32>
    %25 = math.sqrt %24 : vector<16x1xf32>
    %26 = arith.truncf %17 : vector<16x67xf32> to vector<16x67xbf16>
    %c0_8 = arith.constant 0 : index
    %c0_9 = arith.constant 0 : index
    %27 = vector.load %arg4[%c0_8, %c0_9] : memref<67x64xbf16, #tpu.memory_space<vmem>>, vector<67x64xbf16>
    %cst_10 = arith.constant dense<0.000000e+00> : vector<16x64xf32>
    %28 = tpu.matmul %26, %27, %cst_10 {dimension_numbers = #tpu.dot_dimension_numbers<[1], [0], [0], [1], [0, 0, 1, 1], [], []>} : vector<16x67xbf16>, vector<67x64xbf16>, vector<16x64xf32> -> vector<16x64xf32>
    %29 = arith.truncf %18 : vector<16x67xf32> to vector<16x67xbf16>
    %c0_11 = arith.constant 0 : index
    %c0_12 = arith.constant 0 : index
    %30 = vector.load %arg5[%c0_11, %c0_12] : memref<67x64xbf16, #tpu.memory_space<vmem>>, vector<67x64xbf16>
    %cst_13 = arith.constant dense<0.000000e+00> : vector<16x64xf32>
    %31 = tpu.matmul %29, %30, %cst_13 {dimension_numbers = #tpu.dot_dimension_numbers<[1], [0], [0], [1], [0, 0, 1, 1], [], []>} : vector<16x67xbf16>, vector<67x64xbf16>, vector<16x64xf32> -> vector<16x64xf32>
    %32 = arith.addf %28, %31 : vector<16x64xf32>
    %c0_14 = arith.constant 0 : index
    %c0_15 = arith.constant 0 : index
    %33 = vector.load %arg6[%c0_14, %c0_15] : memref<1x64xf32, #tpu.memory_space<vmem>>, vector<1x64xf32>
    %34 = vector.broadcast %25 : vector<16x1xf32> to vector<16x64xf32>
    %35 = vector.broadcast %33 : vector<1x64xf32> to vector<16x64xf32>
    %36 = arith.mulf %34, %35 : vector<16x64xf32>
    %37 = arith.addf %32, %36 : vector<16x64xf32>
    %c0_16 = arith.constant 0 : index
    %c0_17 = arith.constant 0 : index
    %38 = vector.load %arg7[%c0_16, %c0_17] : memref<1x64xf32, #tpu.memory_space<vmem>>, vector<1x64xf32>
    %39 = vector.broadcast %38 : vector<1x64xf32> to vector<16x64xf32>
    %40 = arith.addf %37, %39 : vector<16x64xf32>
    %41 = tpu.iota {dimensions = array<i32: 1>} : vector<16x64xi32>
    %c32_i32 = arith.constant 32 : i32
    %42 = vector.broadcast %c32_i32 : i32 to vector<16x64xi32>
    %43 = arith.cmpi slt, %41, %42 : vector<16x64xi32>
    %44 = arith.negf %40 : vector<16x64xf32>
    %45 = math.exp %44 : vector<16x64xf32>
    %cst_18 = arith.constant 1.000000e+00 : f32
    %46 = vector.broadcast %cst_18 : f32 to vector<16x64xf32>
    %47 = arith.addf %46, %45 : vector<16x64xf32>
    %48 = arith.divf %46, %47 : vector<16x64xf32>
    %49 = arith.mulf %40, %48 : vector<16x64xf32>
    %50 = math.tanh %40 : vector<16x64xf32>
    %51 = arith.select %43, %49, %50 : vector<16x64xi1>, vector<16x64xf32>
    %52 = arith.truncf %51 : vector<16x64xf32> to vector<16x64xbf16>
    %c0_19 = arith.constant 0 : index
    %c0_20 = arith.constant 0 : index
    %53 = vector.load %arg8[%c0_19, %c0_20] : memref<64x64xbf16, #tpu.memory_space<vmem>>, vector<64x64xbf16>
    %cst_21 = arith.constant dense<0.000000e+00> : vector<16x64xf32>
    %54 = tpu.matmul %52, %53, %cst_21 {dimension_numbers = #tpu.dot_dimension_numbers<[1], [0], [0], [1], [0, 0, 1, 1], [], []>} : vector<16x64xbf16>, vector<64x64xbf16>, vector<16x64xf32> -> vector<16x64xf32>
    %c0_22 = arith.constant 0 : index
    %c0_23 = arith.constant 0 : index
    %55 = vector.load %arg9[%c0_22, %c0_23] : memref<1x64xf32, #tpu.memory_space<vmem>>, vector<1x64xf32>
    %56 = vector.broadcast %55 : vector<1x64xf32> to vector<16x64xf32>
    %57 = arith.addf %54, %56 : vector<16x64xf32>
    %c32_i32_24 = arith.constant 32 : i32
    %58 = vector.broadcast %c32_i32_24 : i32 to vector<16x64xi32>
    %59 = arith.cmpi slt, %41, %58 : vector<16x64xi32>
    %60 = arith.negf %57 : vector<16x64xf32>
    %61 = math.exp %60 : vector<16x64xf32>
    %cst_25 = arith.constant 1.000000e+00 : f32
    %62 = vector.broadcast %cst_25 : f32 to vector<16x64xf32>
    %63 = arith.addf %62, %61 : vector<16x64xf32>
    %64 = arith.divf %62, %63 : vector<16x64xf32>
    %65 = arith.mulf %57, %64 : vector<16x64xf32>
    %66 = math.tanh %57 : vector<16x64xf32>
    %67 = arith.select %59, %65, %66 : vector<16x64xi1>, vector<16x64xf32>
    %c0_26 = arith.constant 0 : index
    %c0_27 = arith.constant 0 : index
    %68 = vector.load %arg16[%c0_26, %c0_27] : memref<8x64xf32, #tpu.memory_space<vmem>>, vector<8x64xf32>
    %69 = arith.truncf %67 : vector<16x64xf32> to vector<16x64xbf16>
    %cst_28 = arith.constant dense<0.000000e+00> : vector<8x64xf32>
    %70 = tpu.matmul %15, %69, %cst_28 {dimension_numbers = #tpu.dot_dimension_numbers<[0], [0], [1], [1], [0, 1, 1, 1], [], []>} : vector<16x8xbf16>, vector<16x64xbf16>, vector<8x64xf32> -> vector<8x64xf32>
    %71 = arith.addf %68, %70 : vector<8x64xf32>
    %c0_29 = arith.constant 0 : index
    %c0_30 = arith.constant 0 : index
    %72 = vector.load %arg16[%c0_29, %c0_30] : memref<8x64xf32, #tpu.memory_space<vmem>>, vector<8x64xf32>
    tpu.vector_store %arg16[%c0_29, %c0_30], %71 {strides = array<i32>} : memref<8x64xf32, #tpu.memory_space<vmem>>, vector<8x64xf32>,
    %c0_i32_31 = arith.constant 0 : i32
    %73 = arith.cmpi eq, %arg0, %c0_i32_31 : i32
    %74 = arith.extui %73 : i1 to i32
    %c0_i32_32 = arith.constant 0 : i32
    %75 = arith.cmpi ne, %74, %c0_i32_32 : i32
    scf.if %75 {
      %c0_33 = arith.constant 0 : index
      %c0_34 = arith.constant 0 : index
      %76 = vector.load %arg16[%c0_33, %c0_34] : memref<8x64xf32, #tpu.memory_space<vmem>>, vector<8x64xf32>
      %c0_35 = arith.constant 0 : index
      %c0_36 = arith.constant 0 : index
      %77 = vector.load %arg10[%c0_35, %c0_36] : memref<67x64xbf16, #tpu.memory_space<vmem>>, vector<67x64xbf16>
      %cst_37 = arith.constant dense<0.000000e+00> : vector<8x64xf32>
      %78 = tpu.matmul %16, %77, %cst_37 {dimension_numbers = #tpu.dot_dimension_numbers<[1], [0], [0], [1], [0, 0, 1, 1], [], []>} : vector<8x67xbf16>, vector<67x64xbf16>, vector<8x64xf32> -> vector<8x64xf32>
      %79 = arith.truncf %76 : vector<8x64xf32> to vector<8x64xbf16>
      %c0_38 = arith.constant 0 : index
      %c0_39 = arith.constant 0 : index
      %80 = vector.load %arg11[%c0_38, %c0_39] : memref<64x64xbf16, #tpu.memory_space<vmem>>, vector<64x64xbf16>
      %cst_40 = arith.constant dense<0.000000e+00> : vector<8x64xf32>
      %81 = tpu.matmul %79, %80, %cst_40 {dimension_numbers = #tpu.dot_dimension_numbers<[1], [0], [0], [1], [0, 0, 1, 1], [], []>} : vector<8x64xbf16>, vector<64x64xbf16>, vector<8x64xf32> -> vector<8x64xf32>
      %82 = arith.addf %78, %81 : vector<8x64xf32>
      %c0_41 = arith.constant 0 : index
      %c0_42 = arith.constant 0 : index
      %83 = vector.load %arg12[%c0_41, %c0_42] : memref<1x64xf32, #tpu.memory_space<vmem>>, vector<1x64xf32>
      %84 = vector.broadcast %83 : vector<1x64xf32> to vector<8x64xf32>
      %85 = arith.addf %82, %84 : vector<8x64xf32>
      %86 = tpu.iota {dimensions = array<i32: 1>} : vector<8x64xi32>
      %c32_i32_43 = arith.constant 32 : i32
      %87 = vector.broadcast %c32_i32_43 : i32 to vector<8x64xi32>
      %88 = arith.cmpi slt, %86, %87 : vector<8x64xi32>
      %89 = arith.negf %85 : vector<8x64xf32>
      %90 = math.exp %89 : vector<8x64xf32>
      %cst_44 = arith.constant 1.000000e+00 : f32
      %91 = vector.broadcast %cst_44 : f32 to vector<8x64xf32>
      %92 = arith.addf %91, %90 : vector<8x64xf32>
      %93 = arith.divf %91, %92 : vector<8x64xf32>
      %94 = arith.mulf %85, %93 : vector<8x64xf32>
      %95 = math.tanh %85 : vector<8x64xf32>
      %96 = arith.select %88, %94, %95 : vector<8x64xi1>, vector<8x64xf32>
      %97 = arith.truncf %96 : vector<8x64xf32> to vector<8x64xbf16>
      %c0_45 = arith.constant 0 : index
      %c0_46 = arith.constant 0 : index
      %98 = vector.load %arg13[%c0_45, %c0_46] : memref<64x64xbf16, #tpu.memory_space<vmem>>, vector<64x64xbf16>
      %cst_47 = arith.constant dense<0.000000e+00> : vector<8x64xf32>
      %99 = tpu.matmul %97, %98, %cst_47 {dimension_numbers = #tpu.dot_dimension_numbers<[1], [0], [0], [1], [0, 0, 1, 1], [], []>} : vector<8x64xbf16>, vector<64x64xbf16>, vector<8x64xf32> -> vector<8x64xf32>
      %c0_48 = arith.constant 0 : index
      %c0_49 = arith.constant 0 : index
      %100 = vector.load %arg14[%c0_48, %c0_49] : memref<1x64xf32, #tpu.memory_space<vmem>>, vector<1x64xf32>
      %101 = vector.broadcast %100 : vector<1x64xf32> to vector<8x64xf32>
      %102 = arith.addf %99, %101 : vector<8x64xf32>
      %c32_i32_50 = arith.constant 32 : i32
      %103 = vector.broadcast %c32_i32_50 : i32 to vector<8x64xi32>
      %104 = arith.cmpi slt, %86, %103 : vector<8x64xi32>
      %105 = math.tanh %102 : vector<8x64xf32>
      %106 = arith.select %104, %102, %105 : vector<8x64xi1>, vector<8x64xf32>
      %c0_51 = arith.constant 0 : index
      %c0_52 = arith.constant 0 : index
      %107 = vector.load %arg15[%c0_51, %c0_52] : memref<8x64xf32, #tpu.memory_space<vmem>>, vector<8x64xf32>
      tpu.vector_store %arg15[%c0_51, %c0_52], %106 {strides = array<i32>} : memref<8x64xf32, #tpu.memory_space<vmem>>, vector<8x64xf32>,
    } else {
    }
    return
  }
  func.func @transform_0(%arg0: i32) -> (i32, i32) {
    %c0_i32 = arith.constant 0 : i32
    %c0_i32_0 = arith.constant 0 : i32
    return %arg0, %c0_i32 : i32, i32
  }
  func.func @transform_1(%arg0: i32) -> (i32, i32) {
    %c0_i32 = arith.constant 0 : i32
    %c0_i32_0 = arith.constant 0 : i32
    return %arg0, %c0_i32 : i32, i32
  }
  func.func @transform_2(%arg0: i32) -> (i32, i32) {
    %c0_i32 = arith.constant 0 : i32
    %c0_i32_0 = arith.constant 0 : i32
    %c0_i32_1 = arith.constant 0 : i32
    return %c0_i32, %c0_i32_0 : i32, i32
  }
  func.func @transform_3(%arg0: i32) -> (i32, i32) {
    %c0_i32 = arith.constant 0 : i32
    %c0_i32_0 = arith.constant 0 : i32
    %c0_i32_1 = arith.constant 0 : i32
    return %c0_i32, %c0_i32_0 : i32, i32
  }
  func.func @transform_4(%arg0: i32) -> (i32, i32) {
    %c0_i32 = arith.constant 0 : i32
    %c0_i32_0 = arith.constant 0 : i32
    %c0_i32_1 = arith.constant 0 : i32
    return %c0_i32, %c0_i32_0 : i32, i32
  }
  func.func @transform_5(%arg0: i32) -> (i32, i32) {
    %c0_i32 = arith.constant 0 : i32
    %c0_i32_0 = arith.constant 0 : i32
    %c0_i32_1 = arith.constant 0 : i32
    return %c0_i32, %c0_i32_0 : i32, i32
  }
  func.func @transform_6(%arg0: i32) -> (i32, i32) {
    %c0_i32 = arith.constant 0 : i32
    %c0_i32_0 = arith.constant 0 : i32
    %c0_i32_1 = arith.constant 0 : i32
    return %c0_i32, %c0_i32_0 : i32, i32
  }
  func.func @transform_7(%arg0: i32) -> (i32, i32) {
    %c0_i32 = arith.constant 0 : i32
    %c0_i32_0 = arith.constant 0 : i32
    %c0_i32_1 = arith.constant 0 : i32
    return %c0_i32, %c0_i32_0 : i32, i32
  }
  func.func @transform_8(%arg0: i32) -> (i32, i32) {
    %c0_i32 = arith.constant 0 : i32
    %c0_i32_0 = arith.constant 0 : i32
    %c0_i32_1 = arith.constant 0 : i32
    return %c0_i32, %c0_i32_0 : i32, i32
  }
  func.func @transform_9(%arg0: i32) -> (i32, i32) {
    %c0_i32 = arith.constant 0 : i32
    %c0_i32_0 = arith.constant 0 : i32
    %c0_i32_1 = arith.constant 0 : i32
    return %c0_i32, %c0_i32_0 : i32, i32
  }
  func.func @transform_10(%arg0: i32) -> (i32, i32) {
    %c0_i32 = arith.constant 0 : i32
    %c0_i32_0 = arith.constant 0 : i32
    %c0_i32_1 = arith.constant 0 : i32
    return %c0_i32, %c0_i32_0 : i32, i32
  }
  func.func @transform_11(%arg0: i32) -> (i32, i32) {
    %c0_i32 = arith.constant 0 : i32
    %c0_i32_0 = arith.constant 0 : i32
    %c0_i32_1 = arith.constant 0 : i32
    return %c0_i32, %c0_i32_0 : i32, i32
  }
  func.func @transform_12(%arg0: i32) -> (i32, i32) {
    %c0_i32 = arith.constant 0 : i32
    %c0_i32_0 = arith.constant 0 : i32
    %c0_i32_1 = arith.constant 0 : i32
    return %c0_i32, %c0_i32_0 : i32, i32
  }
  func.func @transform_13(%arg0: i32) -> (i32, i32) {
    %c0_i32 = arith.constant 0 : i32
    %c0_i32_0 = arith.constant 0 : i32
    %c0_i32_1 = arith.constant 0 : i32
    return %c0_i32, %c0_i32_0 : i32, i32
  }
  func.func @transform_14(%arg0: i32) -> (i32, i32) {
    %c0_i32 = arith.constant 0 : i32
    %c0_i32_0 = arith.constant 0 : i32
    %c0_i32_1 = arith.constant 0 : i32
    return %c0_i32, %c0_i32_0 : i32, i32
  }
}

</mosaic_0001>

<llo_original>
// kernel: tpu_custom_call.1
$region0: #{tpu_custom_call.1}
  #allocation0 [shape = 'u32[]', space=smem, size = 0x4, offset = 0x4, fixed_abs, tag = 'smem constant byte address 0x4 - core index']
  #allocation1 [shape = 'u32[72,128]{1,0:T(1,128)}', space=vmem, size = 0x9000, scoped, tag = 'internal scratch']
  #allocation2 [shape = 'f32[8,64]{1,0:T(8,128)}', space=vmem, size = 0x1000, scoped, tag = 'scratch operand']
  %s0 = inlined_call_operand.vmem [shape: s32[16,1], index: 0, kind: input, shape index: {}]
  %s1 = inlined_call_operand.vmem [shape: s32[16,1], index: 1, kind: input, shape index: {}]
  %s2 = inlined_call_operand.vmem [shape: bf16[8,67], index: 2, kind: input, shape index: {}]
  %s3 = inlined_call_operand.vmem [shape: bf16[67,64], index: 3, kind: input, shape index: {}]
  %s4 = inlined_call_operand.vmem [shape: bf16[67,64], index: 4, kind: input, shape index: {}]
  %s5 = inlined_call_operand.vmem [shape: f32[1,64], index: 5, kind: input, shape index: {}]
  %s6 = inlined_call_operand.vmem [shape: f32[1,64], index: 6, kind: input, shape index: {}]
  %s7 = inlined_call_operand.vmem [shape: bf16[64,64], index: 7, kind: input, shape index: {}]
  %s8 = inlined_call_operand.vmem [shape: f32[1,64], index: 8, kind: input, shape index: {}]
  %s9 = inlined_call_operand.vmem [shape: bf16[67,64], index: 9, kind: input, shape index: {}]
  %s10 = inlined_call_operand.vmem [shape: bf16[64,64], index: 10, kind: input, shape index: {}]
  %s11 = inlined_call_operand.vmem [shape: f32[1,64], index: 11, kind: input, shape index: {}]
  %s12 = inlined_call_operand.vmem [shape: bf16[64,64], index: 12, kind: input, shape index: {}]
  %s13 = inlined_call_operand.vmem [shape: f32[1,64], index: 13, kind: input, shape index: {}]
  %s14 = inlined_call_operand.hbm [shape: f32[8,64], index: 14, kind: output, shape index: {}]
  %s15 = sld [smem:[#allocation0]]
  $region74: #{tpu_custom_call.1} parent=0
    _
  %s17 = ssub.s32 1, %s15
  %s18 = scalar_select 0, %s17, %s15
  $region1: #{tpu_custom_call.1} parent=0
    #allocation3 [shape = 'u8[4096]{0}', space=vmem, size = 0x1000, scoped, tag = 'output window, operand 0, single buffered']
    #allocation4 [shape = 's32[1]{0}', space=sflag, size = 0x4, scoped, tag = 'scoped memory for tpu_custom_call.1']
    %19 = vsyncpa [#allocation4], 0
    // Predicated region
    $region2: #{tpu_custom_call.1} parent=1 // pred_check
      _
    $region3: #{tpu_custom_call.1} parent=1 // pred_check_branch
      %21 = sbr.rel (0) target = $region5
    $region4: #{tpu_custom_call.1} parent=1 // pred_region
      _
    $region5: #{tpu_custom_call.1} parent=1 // pred_fallthru
      _
    // Predicated region
    $region6: #{tpu_custom_call.1} parent=1 // pred_check
      _
    $region7: #{tpu_custom_call.1} parent=1 // pred_check_branch
      %23 = sbr.rel (0) target = $region9
    $region8: #{tpu_custom_call.1} parent=1 // pred_region
      _
    $region9: #{tpu_custom_call.1} parent=1 // pred_fallthru
      _
    // Predicated region
    $region10: #{tpu_custom_call.1} parent=1 // pred_check
      _
    $region11: #{tpu_custom_call.1} parent=1 // pred_check_branch
      %25 = sbr.rel (0) target = $region13
    $region12: #{tpu_custom_call.1} parent=1 // pred_region
      _
    $region13: #{tpu_custom_call.1} parent=1 // pred_fallthru
      _
    // Predicated region
    $region14: #{tpu_custom_call.1} parent=1 // pred_check
      _
    $region15: #{tpu_custom_call.1} parent=1 // pred_check_branch
      %27 = sbr.rel (0) target = $region17
    $region16: #{tpu_custom_call.1} parent=1 // pred_region
      _
    $region17: #{tpu_custom_call.1} parent=1 // pred_fallthru
      _
    // Predicated region
    $region18: #{tpu_custom_call.1} parent=1 // pred_check
      _
    $region19: #{tpu_custom_call.1} parent=1 // pred_check_branch
      %29 = sbr.rel (0) target = $region21
    $region20: #{tpu_custom_call.1} parent=1 // pred_region
      _
    $region21: #{tpu_custom_call.1} parent=1 // pred_fallthru
      _
    // Predicated region
    $region22: #{tpu_custom_call.1} parent=1 // pred_check
      _
    $region23: #{tpu_custom_call.1} parent=1 // pred_check_branch
      %31 = sbr.rel (0) target = $region25
    $region24: #{tpu_custom_call.1} parent=1 // pred_region
      _
    $region25: #{tpu_custom_call.1} parent=1 // pred_fallthru
      _
    // Predicated region
    $region26: #{tpu_custom_call.1} parent=1 // pred_check
      _
    $region27: #{tpu_custom_call.1} parent=1 // pred_check_branch
      %33 = sbr.rel (0) target = $region29
    $region28: #{tpu_custom_call.1} parent=1 // pred_region
      _
    $region29: #{tpu_custom_call.1} parent=1 // pred_fallthru
      _
    // Predicated region
    $region30: #{tpu_custom_call.1} parent=1 // pred_check
      _
    $region31: #{tpu_custom_call.1} parent=1 // pred_check_branch
      %35 = sbr.rel (0) target = $region33
    $region32: #{tpu_custom_call.1} parent=1 // pred_region
      _
    $region33: #{tpu_custom_call.1} parent=1 // pred_fallthru
      _
    // Predicated region
    $region34: #{tpu_custom_call.1} parent=1 // pred_check
      _
    $region35: #{tpu_custom_call.1} parent=1 // pred_check_branch
      %37 = sbr.rel (0) target = $region37
    $region36: #{tpu_custom_call.1} parent=1 // pred_region
      _
    $region37: #{tpu_custom_call.1} parent=1 // pred_fallthru
      _
    // Predicated region
    $region38: #{tpu_custom_call.1} parent=1 // pred_check
      _
    $region39: #{tpu_custom_call.1} parent=1 // pred_check_branch
      %39 = sbr.rel (0) target = $region41
    $region40: #{tpu_custom_call.1} parent=1 // pred_region
      _
    $region41: #{tpu_custom_call.1} parent=1 // pred_fallthru
      _
    // Predicated region
    $region42: #{tpu_custom_call.1} parent=1 // pred_check
      _
    $region43: #{tpu_custom_call.1} parent=1 // pred_check_branch
      %41 = sbr.rel (0) target = $region45
    $region44: #{tpu_custom_call.1} parent=1 // pred_region
      _
    $region45: #{tpu_custom_call.1} parent=1 // pred_fallthru
      _
    // Predicated region
    $region46: #{tpu_custom_call.1} parent=1 // pred_check
      _
    $region47: #{tpu_custom_call.1} parent=1 // pred_check_branch
      %43 = sbr.rel (0) target = $region49
    $region48: #{tpu_custom_call.1} parent=1 // pred_region
      _
    $region49: #{tpu_custom_call.1} parent=1 // pred_fallthru
      _
    // Predicated region
    $region50: #{tpu_custom_call.1} parent=1 // pred_check
      _
    $region51: #{tpu_custom_call.1} parent=1 // pred_check_branch
      %45 = sbr.rel (0) target = $region53
    $region52: #{tpu_custom_call.1} parent=1 // pred_region
      _
    $region53: #{tpu_custom_call.1} parent=1 // pred_fallthru
      _
    // Predicated region
    $region54: #{tpu_custom_call.1} parent=1 // pred_check
      _
    $region55: #{tpu_custom_call.1} parent=1 // pred_check_branch
      %47 = sbr.rel (0) target = $region57
    $region56: #{tpu_custom_call.1} parent=1 // pred_region
      _
    $region57: #{tpu_custom_call.1} parent=1 // pred_fallthru
      _
    %p49 = scmp.eq.s32.totalorder 0, 0
    // Predicated region
    $region58: #{tpu_custom_call.1} parent=1 // pred_check
      %p50 = pneg %p49
    $region59: #{tpu_custom_call.1} parent=1 // pred_check_branch
      %52 = sbr.rel (%p50) target = $region61
    $region60: #{tpu_custom_call.1} parent=1 // pred_region
      %vm53 = vcmask 523264
      %54 = vst.msk [vmem:[#allocation2] sm:$0xff] %vm53, 0.0
    $region61: #{tpu_custom_call.1} parent=1 // pred_fallthru
      _
    %v55 = vld [vmem:[%s0] sm:$0xff]
    %v56 = vld [vmem:[%s0 + $0x8] sm:$0xff]
    %v57 = vld [vmem:[%s1] sm:$0xff]
    %v58 = vld [vmem:[%s1 + $0x8] sm:$0xff]
    %v59 = vlaneseq
    %v60 = vand.u32 %v59, 127
    %61 = vset.pattern.permute.xlu0 0
    %62 = vperm.xlu0 %61, %v55
    %v63 = vpop.permute.xlu0 %62
    %64 = vset.pattern.permute.xlu0 0
    %65 = vperm.xlu0 %64, %v56
    %v66 = vpop.permute.xlu0 %65
    %vm67 = vcmp.eq.s32.totalorder %v63, %v60
    %vm68 = vcmp.eq.s32.totalorder %v66, %v60
    %v69 = vsel %vm67, 1, 0
    %v70 = vsel %vm68, 1, 0
    %v71 = vcvt.s32.f32 %v69
    %v72 = vcvt.s32.f32 %v70
    %v73 = vpack.c.bf16 %v72, %v71
    %74 = vset.pattern.permute.xlu0 0
    %75 = vperm.xlu0 %74, %v57
    %v76 = vpop.permute.xlu0 %75
    %77 = vset.pattern.permute.xlu0 0
    %78 = vperm.xlu0 %77, %v58
    %v79 = vpop.permute.xlu0 %78
    %vm80 = vcmp.eq.s32.totalorder %v76, %v60
    %vm81 = vcmp.eq.s32.totalorder %v79, %v60
    %v82 = vsel %vm80, 1, 0
    %v83 = vsel %vm81, 1, 0
    %v84 = vcvt.s32.f32 %v82
    %v85 = vcvt.s32.f32 %v83
    %v86 = vpack.c.bf16 %v85, %v84
    %v87 = vld [vmem:[%s2] sm:$0xf]
    %vm88 = vcmask 64512
    %v90 = vsel %vm88, %v73, 0
    %vm92 = vcmask 1043456
    %v94 = vsel %vm92, %v87, 0
    %96 = vmatpush.bf16.msra.mxu0 0
    %97 = vmatpush.bf16.msra.mxu0 0
    %98 = vmatpush.bf16.msra.mxu0 0
    %99 = vmatpush.bf16.msra.mxu0 0
    %100 = vmatpush.bf16.msra.mxu0 0
    %101 = vmatpush.bf16.msra.mxu0 0
    %102 = vmatpush.bf16.msra.mxu0 0
    %103 = vmatpush.bf16.msra.mxu0 %v94
    %104 = vmatmul.bf16.gmra.mxu0 %v90
    %v105 = vpop.f32.mrf.mxu0
    %v106 = vadd.f32 0.0, %v105
    %v107 = vpop.f32.mrf.mxu0
    %v108 = vadd.f32 0.0, %v107
    %109 = vdwg.mxu0
    %v111 = vsel %vm88, %v86, 0
    %113 = vmatpush.bf16.msra.mxu0 0
    %114 = vmatpush.bf16.msra.mxu0 0
    %115 = vmatpush.bf16.msra.mxu0 0
    %116 = vmatpush.bf16.msra.mxu0 0
    %117 = vmatpush.bf16.msra.mxu0 0
    %118 = vmatpush.bf16.msra.mxu0 0
    %119 = vmatpush.bf16.msra.mxu0 0
    %120 = vmatpush.bf16.msra.mxu0 %v94
    %121 = vmatmul.bf16.gmra.mxu0 %v111
    %v122 = vpop.f32.mrf.mxu0
    %v123 = vadd.f32 0.0, %v122
    %v124 = vpop.f32.mrf.mxu0
    %v125 = vadd.f32 0.0, %v124
    %126 = vdwg.mxu0
    %v127 = vsub.f32 %v106, %v123
    %v128 = vsub.f32 %v108, %v125
    %v129 = vmul.f32 %v127, %v127
    %v130 = vmul.f32 %v128, %v128
    %133 = vrot.lane.b32.xlu0 %v129, 64
    %v134 = vpop.permute.xlu0 %133
    %135 = vrot.lane.b32.xlu0 %v130, 64
    %v136 = vpop.permute.xlu0 %135
    %vm139 = vcmask 23552
    %v140 = vsel %vm139, %v134, 0.0
    %141 = vadd.xlane.f32.xlu0 %v140
    %v142 = vpop.xlane.xlu0 %141
    %v143 = vsel %vm139, %v136, 0.0
    %144 = vadd.xlane.f32.xlu0 %v143
    %v145 = vpop.xlane.xlu0 %144
    %v146 = vrsqrt.pop %v142
    %v147 = vmul.f32 %v146, %v142
    %v148 = vmul.f32 %v147, %v146
    %v149 = vmul.f32 0.5, %v148
    %v150 = vsub.f32 1.5, %v149
    %v151 = vmul.f32 %v146, %v150
    %v152 = vmul.f32 %v142, %v151
    %vm153 = vcmp.eq.f32.partialorder %v142, inf
    %v154 = vsel %vm153, %v142, %v152
    %vm155 = vcmp.eq.f32.partialorder %v142, 0.0
    %v156 = vand.u32 %v142, 2147483648
    %v157 = vsel %vm155, %v156, %v154
    %v158 = vrsqrt.pop %v145
    %v159 = vmul.f32 %v158, %v145
    %v160 = vmul.f32 %v159, %v158
    %v161 = vmul.f32 0.5, %v160
    %v162 = vsub.f32 1.5, %v161
    %v163 = vmul.f32 %v158, %v162
    %v164 = vmul.f32 %v145, %v163
    %vm165 = vcmp.eq.f32.partialorder %v145, inf
    %v166 = vsel %vm165, %v145, %v164
    %vm167 = vcmp.eq.f32.partialorder %v145, 0.0
    %v168 = vand.u32 %v145, 2147483648
    %v169 = vsel %vm167, %v168, %v166
    %v170 = vpack.c.bf16 %v108, %v106
    %v171 = vld [vmem:[%s3] sm:$0xf]
    %v172 = vld [vmem:[%s3 + $0x4] sm:$0xf]
    %v173 = vld [vmem:[%s3 + $0x8] sm:$0xf]
    %v174 = vld [vmem:[%s3 + $0xc] sm:$0xf]
    %v175 = vld [vmem:[%s3 + $0x10] sm:$0xf]
    %v176 = vld [vmem:[%s3 + $0x14] sm:$0xf]
    %v177 = vld [vmem:[%s3 + $0x18] sm:$0xf]
    %v178 = vld [vmem:[%s3 + $0x1c] sm:$0xf]
    %v179 = vld [vmem:[%s3 + $0x20] sm:$0x3]
    %v180 = vpack.c.bf16 %v125, %v123
    %v181 = vld [vmem:[%s4] sm:$0xf]
    %v182 = vld [vmem:[%s4 + $0x4] sm:$0xf]
    %v183 = vld [vmem:[%s4 + $0x8] sm:$0xf]
    %v184 = vld [vmem:[%s4 + $0xc] sm:$0xf]
    %v185 = vld [vmem:[%s4 + $0x10] sm:$0xf]
    %v186 = vld [vmem:[%s4 + $0x14] sm:$0xf]
    %v187 = vld [vmem:[%s4 + $0x18] sm:$0xf]
    %v188 = vld [vmem:[%s4 + $0x1c] sm:$0xf]
    %v189 = vld [vmem:[%s4 + $0x20] sm:$0x3]
    %v199 = vunpack.c.l.b16 %v181
    %v200 = vunpack.c.l.b16 %v182
    %v201 = vunpack.c.l.b16 %v183
    %v202 = vunpack.c.l.b16 %v184
    %v203 = vunpack.c.l.b16 %v185
    %v204 = vunpack.c.l.b16 %v186
    %v205 = vunpack.c.l.b16 %v187
    %v206 = vunpack.c.l.b16 %v188
    %v207 = vunpack.c.l.b16 %v189
    %v208 = vpack.c.b16 %v200, %v199
    %v209 = vpack.c.b16 %v202, %v201
    %v210 = vpack.c.b16 %v204, %v203
    %v211 = vpack.c.b16 %v206, %v205
    %v212 = vpack.c.b16 %v207, %v207
    %vm217 = vcmask 547840
    %v219 = vsel %vm217, %v180, 0
    %vm221 = vcmask 1040384
    %vm222 = vcmask 1041408
    %v223 = vsel %vm221, 4294967295, 65535
    %v224 = vsel %vm222, %v223, 0
    %v226 = vand.u32 %v212, %v224
    %228 = vmatpush.bf16.msra.mxu0 0
    %229 = vmatpush.bf16.msra.mxu0 0
    %230 = vmatpush.bf16.msra.mxu0 0
    %231 = vmatpush.bf16.msra.mxu0 %v226
    %232 = vmatpush.bf16.msra.mxu0 %v211
    %233 = vmatpush.bf16.msra.mxu0 %v210
    %234 = vmatpush.bf16.msra.mxu0 %v209
    %235 = vmatpush.bf16.msra.mxu0 %v208
    %236 = vmatmul.bf16.gmra.mxu0 %v219
    %v237 = vpop.f32.mrf.mxu0
    %v238 = vadd.f32 0.0, %v237
    %v239 = vpop.f32.mrf.mxu0
    %v240 = vadd.f32 0.0, %v239
    %241 = vdwg.mxu0
    %v251 = vunpack.c.l.b16 %v171
    %v252 = vunpack.c.l.b16 %v172
    %v253 = vunpack.c.l.b16 %v173
    %v254 = vunpack.c.l.b16 %v174
    %v255 = vunpack.c.l.b16 %v175
    %v256 = vunpack.c.l.b16 %v176
    %v257 = vunpack.c.l.b16 %v177
    %v258 = vunpack.c.l.b16 %v178
    %v259 = vunpack.c.l.b16 %v179
    %v260 = vpack.c.b16 %v252, %v251
    %v261 = vpack.c.b16 %v254, %v253
    %v262 = vpack.c.b16 %v256, %v255
    %v263 = vpack.c.b16 %v258, %v257
    %v264 = vpack.c.b16 %v259, %v259
    %v270 = vsel %vm217, %v170, 0
    %v273 = vand.u32 %v264, %v224
    %275 = vmatpush.bf16.msra.mxu0 0
    %276 = vmatpush.bf16.msra.mxu0 0
    %277 = vmatpush.bf16.msra.mxu0 0
    %278 = vmatpush.bf16.msra.mxu0 %v273
    %279 = vmatpush.bf16.msra.mxu0 %v263
    %280 = vmatpush.bf16.msra.mxu0 %v262
    %281 = vmatpush.bf16.msra.mxu0 %v261
    %282 = vmatpush.bf16.msra.mxu0 %v260
    %283 = vmatmul.bf16.gmra.mxu0 %v270
    %v284 = vpop.f32.mrf.mxu0
    %v285 = vadd.f32 %v238, %v284
    %v286 = vpop.f32.mrf.mxu0
    %v287 = vadd.f32 %v240, %v286
    %288 = vdwg.mxu0
    %v289 = vld [vmem:[%s5] sm:$0x1]
    %v291 = vperm.slane %v289, 0
    %v293 = vmul.f32 %v157, %v291
    %v294 = vmul.f32 %v169, %v291
    %v295 = vadd.f32 %v285, %v293
    %v296 = vadd.f32 %v287, %v294
    %v297 = vld [vmem:[%s6] sm:$0x1]
    %v299 = vperm.slane %v297, 0
    %v301 = vadd.f32 %v295, %v299
    %v302 = vadd.f32 %v296, %v299
    %vm303 = vcmp.lt.s32.totalorder %v60, 32
    %v304 = vxor.u32 %v301, 2147483648
    %v305 = vxor.u32 %v302, 2147483648
    %v306 = vmul.f32 %v304, 1.442695
    %v307 = vpow.pop %v306
    %v308 = vmul.f32 %v305, 1.442695
    %v309 = vpow.pop %v308
    %v310 = vadd.f32 %v307, 1.0
    %v311 = vadd.f32 %v309, 1.0
    %v312 = vrcp.pop %v310
    %v313 = vmul.f32 %v310, %v312
    %v314 = vsub.f32 1.0, %v313
    %v315 = vmul.f32 %v312, %v314
    %v316 = vadd.f32 %v312, %v315
    %vm317 = vweird.f32 %v310
    %vm318 = vweird.f32 %v312
    %vm319 = vmor %vm317, %vm318
    %v320 = vsel %vm319, %v312, %v316
    %v321 = vand.u32 2147483647, %v310
    %vm322 = vcmp.eq.f32.partialorder %v321, 8.507059e+37
    %v323 = vand.u32 %v310, 2147483648
    %v324 = vor.u32 1.1754944e-38, %v323
    %v325 = vsel %vm322, %v324, %v320
    %v326 = vmul.f32 1.0, %v325
    %v327 = vrcp.pop %v311
    %v328 = vmul.f32 %v311, %v327
    %v329 = vsub.f32 1.0, %v328
    %v330 = vmul.f32 %v327, %v329
    %v331 = vadd.f32 %v327, %v330
    %vm332 = vweird.f32 %v311
    %vm333 = vweird.f32 %v327
    %vm334 = vmor %vm332, %vm333
    %v335 = vsel %vm334, %v327, %v331
    %v336 = vand.u32 2147483647, %v311
    %vm337 = vcmp.eq.f32.partialorder %v336, 8.507059e+37
    %v338 = vand.u32 %v311, 2147483648
    %v339 = vor.u32 1.1754944e-38, %v338
    %v340 = vsel %vm337, %v339, %v335
    %v341 = vmul.f32 1.0, %v340
    %v342 = vmul.f32 %v301, %v326
    %v343 = vmul.f32 %v302, %v341
    %v344 = vtanh.pop %v301
    %v345 = vtanh.pop %v302
    %v346 = vsel %vm303, %v342, %v344
    %v347 = vsel %vm303, %v343, %v345
    %v348 = vpack.c.bf16 %v347, %v346
    %v349 = vld [vmem:[%s7] sm:$0xf]
    %v350 = vld [vmem:[%s7 + $0x4] sm:$0xf]
    %v351 = vld [vmem:[%s7 + $0x8] sm:$0xf]
    %v352 = vld [vmem:[%s7 + $0xc] sm:$0xf]
    %v353 = vld [vmem:[%s7 + $0x10] sm:$0xf]
    %v354 = vld [vmem:[%s7 + $0x14] sm:$0xf]
    %v355 = vld [vmem:[%s7 + $0x18] sm:$0xf]
    %v356 = vld [vmem:[%s7 + $0x1c] sm:$0xf]
    %v357 = vld [vmem:[%s8] sm:$0x1]
    %v359 = vperm.slane %v357, 0
    %v369 = vunpack.c.l.b16 %v349
    %v370 = vunpack.c.l.b16 %v350
    %v371 = vunpack.c.l.b16 %v351
    %v372 = vunpack.c.l.b16 %v352
    %v373 = vunpack.c.l.b16 %v353
    %v374 = vunpack.c.l.b16 %v354
    %v375 = vunpack.c.l.b16 %v355
    %v376 = vunpack.c.l.b16 %v356
    %v377 = vpack.c.b16 %v370, %v369
    %v378 = vpack.c.b16 %v372, %v371
    %v379 = vpack.c.b16 %v374, %v373
    %v380 = vpack.c.b16 %v376, %v375
    %vm385 = vcmask 523264
    %v387 = vsel %vm385, %v348, 0
    %389 = vmatpush.bf16.msra.mxu0 0
    %390 = vmatpush.bf16.msra.mxu0 0
    %391 = vmatpush.bf16.msra.mxu0 0
    %392 = vmatpush.bf16.msra.mxu0 0
    %393 = vmatpush.bf16.msra.mxu0 %v380
    %394 = vmatpush.bf16.msra.mxu0 %v379
    %395 = vmatpush.bf16.msra.mxu0 %v378
    %396 = vmatpush.bf16.msra.mxu0 %v377
    %397 = vmatmul.bf16.gmra.mxu0 %v387
    %v398 = vpop.f32.mrf.mxu0
    %v399 = vadd.f32 %v359, %v398
    %v400 = vpop.f32.mrf.mxu0
    %v401 = vadd.f32 %v359, %v400
    %402 = vdwg.mxu0
    %v403 = vxor.u32 %v399, 2147483648
    %v404 = vxor.u32 %v401, 2147483648
    %v405 = vmul.f32 %v403, 1.442695
    %v406 = vpow.pop %v405
    %v407 = vmul.f32 %v404, 1.442695
    %v408 = vpow.pop %v407
    %v409 = vadd.f32 %v406, 1.0
    %v410 = vadd.f32 %v408, 1.0
    %v411 = vrcp.pop %v409
    %v412 = vmul.f32 %v409, %v411
    %v413 = vsub.f32 1.0, %v412
    %v414 = vmul.f32 %v411, %v413
    %v415 = vadd.f32 %v411, %v414
    %vm416 = vweird.f32 %v409
    %vm417 = vweird.f32 %v411
    %vm418 = vmor %vm416, %vm417
    %v419 = vsel %vm418, %v411, %v415
    %v420 = vand.u32 2147483647, %v409
    %vm421 = vcmp.eq.f32.partialorder %v420, 8.507059e+37
    %v422 = vand.u32 %v409, 2147483648
    %v423 = vor.u32 1.1754944e-38, %v422
    %v424 = vsel %vm421, %v423, %v419
    %v425 = vmul.f32 1.0, %v424
    %v426 = vrcp.pop %v410
    %v427 = vmul.f32 %v410, %v426
    %v428 = vsub.f32 1.0, %v427
    %v429 = vmul.f32 %v426, %v428
    %v430 = vadd.f32 %v426, %v429
    %vm431 = vweird.f32 %v410
    %vm432 = vweird.f32 %v426
    %vm433 = vmor %vm431, %vm432
    %v434 = vsel %vm433, %v426, %v430
    %v435 = vand.u32 2147483647, %v410
    %vm436 = vcmp.eq.f32.partialorder %v435, 8.507059e+37
    %v437 = vand.u32 %v410, 2147483648
    %v438 = vor.u32 1.1754944e-38, %v437
    %v439 = vsel %vm436, %v438, %v434
    %v440 = vmul.f32 1.0, %v439
    %v441 = vmul.f32 %v399, %v425
    %v442 = vmul.f32 %v401, %v440
    %v443 = vtanh.pop %v399
    %v444 = vtanh.pop %v401
    %v445 = vsel %vm303, %v441, %v443
    %v446 = vsel %vm303, %v442, %v444
    %v447 = vld [vmem:[#allocation2] sm:$0xff]
    %v448 = vpack.c.bf16 %v446, %v445
    %449 = vxpose.xlu0.c.b16.start [1/8] %v86, 128
    %450 = vxpose.xlu0.c.b16.cont [2/8] 0, 128
    %451 = vxpose.xlu0.c.b16.cont [3/8] 0, 128
    %452 = vxpose.xlu0.c.b16.cont [4/8] 0, 128
    %453 = vxpose.xlu0.c.b16.cont [5/8] 0, 128
    %454 = vxpose.xlu0.c.b16.cont [6/8] 0, 128
    %455 = vxpose.xlu0.c.b16.cont [7/8] 0, 128
    %456 = vxpose.xlu0.c.b16.end [8/8] 0, 128
    %v457 = vpop.trf.xlu0
    %v458 = vpop.trf.xlu0
    %v459 = vpop.trf.xlu0
    %v460 = vpop.trf.xlu0
    %v461 = vpop.trf.xlu0
    %v462 = vpop.trf.xlu0
    %v463 = vpop.trf.xlu0
    %v464 = vpop.trf.xlu0
    %vm465 = vcmask 130048
    %v467 = vsel %vm465, %v457, 0
    %469 = vmatpush.bf16.msra.mxu0 0
    %470 = vmatpush.bf16.msra.mxu0 0
    %471 = vmatpush.bf16.msra.mxu0 0
    %472 = vmatpush.bf16.msra.mxu0 0
    %473 = vmatpush.bf16.msra.mxu0 0
    %474 = vmatpush.bf16.msra.mxu0 0
    %475 = vmatpush.bf16.msra.mxu0 0
    %476 = vmatpush.bf16.msra.mxu0 %v448
    %477 = vmatmul.bf16.gmra.mxu0 %v467
    %v478 = vpop.f32.mrf.mxu0
    %v479 = vadd.f32 0.0, %v478
    %v480 = vpop.f32.mrf.mxu0
    %481 = vdwg.mxu0
    %v482 = vadd.f32 %v447, %v479
    %483 = vst.msk [vmem:[#allocation2] sm:$0xff] %vm385, %v482
    // Predicated region
    $region62: #{tpu_custom_call.1} parent=1 // pred_check
      %p484 = pneg %p49
    $region63: #{tpu_custom_call.1} parent=1 // pred_check_branch
      %486 = sbr.rel (%p484) target = $region65
    $region64: #{tpu_custom_call.1} parent=1 // pred_region
      %v487 = vld [vmem:[#allocation2] sm:$0xff]
      %v488 = vld [vmem:[%s9] sm:$0xf]
      %v489 = vld [vmem:[%s9 + $0x4] sm:$0xf]
      %v490 = vld [vmem:[%s9 + $0x8] sm:$0xf]
      %v491 = vld [vmem:[%s9 + $0xc] sm:$0xf]
      %v492 = vld [vmem:[%s9 + $0x10] sm:$0xf]
      %v493 = vld [vmem:[%s9 + $0x14] sm:$0xf]
      %v494 = vld [vmem:[%s9 + $0x18] sm:$0xf]
      %v495 = vld [vmem:[%s9 + $0x1c] sm:$0xf]
      %v496 = vld [vmem:[%s9 + $0x20] sm:$0x3]
      %v497 = vpack.c.bf16 %v487, %v487
      %v498 = vld [vmem:[%s10] sm:$0xf]
      %v499 = vld [vmem:[%s10 + $0x4] sm:$0xf]
      %v500 = vld [vmem:[%s10 + $0x8] sm:$0xf]
      %v501 = vld [vmem:[%s10 + $0xc] sm:$0xf]
      %v502 = vld [vmem:[%s10 + $0x10] sm:$0xf]
      %v503 = vld [vmem:[%s10 + $0x14] sm:$0xf]
      %v504 = vld [vmem:[%s10 + $0x18] sm:$0xf]
      %v505 = vld [vmem:[%s10 + $0x1c] sm:$0xf]
      %v514 = vunpack.c.l.b16 %v498
      %v515 = vunpack.c.l.b16 %v499
      %v516 = vunpack.c.l.b16 %v500
      %v517 = vunpack.c.l.b16 %v501
      %v518 = vunpack.c.l.b16 %v502
      %v519 = vunpack.c.l.b16 %v503
      %v520 = vunpack.c.l.b16 %v504
      %v521 = vunpack.c.l.b16 %v505
      %v522 = vpack.c.b16 %v515, %v514
      %v523 = vpack.c.b16 %v517, %v516
      %v524 = vpack.c.b16 %v519, %v518
      %v525 = vpack.c.b16 %v521, %v520
      %v531 = vsel %vm385, %v497, 0
      %533 = vmatpush.bf16.msra.mxu0 0
      %534 = vmatpush.bf16.msra.mxu0 0
      %535 = vmatpush.bf16.msra.mxu0 0
      %536 = vmatpush.bf16.msra.mxu0 0
      %537 = vmatpush.bf16.msra.mxu0 %v525
      %538 = vmatpush.bf16.msra.mxu0 %v524
      %539 = vmatpush.bf16.msra.mxu0 %v523
      %540 = vmatpush.bf16.msra.mxu0 %v522
      %541 = vmatmul.bf16.gmra.mxu0 %v531
      %v542 = vpop.f32.mrf.mxu0
      %v543 = vadd.f32 0.0, %v542
      %v544 = vpop.f32.mrf.mxu0
      %545 = vdwg.mxu0
      %v555 = vunpack.c.l.b16 %v488
      %v556 = vunpack.c.l.b16 %v489
      %v557 = vunpack.c.l.b16 %v490
      %v558 = vunpack.c.l.b16 %v491
      %v559 = vunpack.c.l.b16 %v492
      %v560 = vunpack.c.l.b16 %v493
      %v561 = vunpack.c.l.b16 %v494
      %v562 = vunpack.c.l.b16 %v495
      %v563 = vunpack.c.l.b16 %v496
      %v564 = vpack.c.b16 %v556, %v555
      %v565 = vpack.c.b16 %v558, %v557
      %v566 = vpack.c.b16 %v560, %v559
      %v567 = vpack.c.b16 %v562, %v561
      %v568 = vpack.c.b16 %v563, %v563
      %v573 = vsel %vm217, %v87, 0
      %v576 = vand.u32 %v568, %v224
      %578 = vmatpush.bf16.msra.mxu0 0
      %579 = vmatpush.bf16.msra.mxu0 0
      %580 = vmatpush.bf16.msra.mxu0 0
      %581 = vmatpush.bf16.msra.mxu0 %v576
      %582 = vmatpush.bf16.msra.mxu0 %v567
      %583 = vmatpush.bf16.msra.mxu0 %v566
      %584 = vmatpush.bf16.msra.mxu0 %v565
      %585 = vmatpush.bf16.msra.mxu0 %v564
      %586 = vmatmul.bf16.gmra.mxu0 %v573
      %v587 = vpop.f32.mrf.mxu0
      %v588 = vadd.f32 %v543, %v587
      %v589 = vpop.f32.mrf.mxu0
      %590 = vdwg.mxu0
      %v591 = vld [vmem:[%s11] sm:$0x1]
      %v593 = vperm.slane %v591, 0
      %v595 = vadd.f32 %v588, %v593
      %v596 = vxor.u32 %v595, 2147483648
      %v597 = vmul.f32 %v596, 1.442695
      %v598 = vpow.pop %v597
      %v599 = vadd.f32 %v598, 1.0
      %v600 = vrcp.pop %v599
      %v601 = vmul.f32 %v599, %v600
      %v602 = vsub.f32 1.0, %v601
      %v603 = vmul.f32 %v600, %v602
      %v604 = vadd.f32 %v600, %v603
      %vm605 = vweird.f32 %v599
      %vm606 = vweird.f32 %v600
      %vm607 = vmor %vm605, %vm606
      %v608 = vsel %vm607, %v600, %v604
      %v609 = vand.u32 2147483647, %v599
      %vm610 = vcmp.eq.f32.partialorder %v609, 8.507059e+37
      %v611 = vand.u32 %v599, 2147483648
      %v612 = vor.u32 1.1754944e-38, %v611
      %v613 = vsel %vm610, %v612, %v608
      %v614 = vmul.f32 1.0, %v613
      %v615 = vmul.f32 %v595, %v614
      %v616 = vtanh.pop %v595
      %v617 = vsel %vm303, %v615, %v616
      %v618 = vpack.c.bf16 %v617, %v617
      %v619 = vld [vmem:[%s12] sm:$0xf]
      %v620 = vld [vmem:[%s12 + $0x4] sm:$0xf]
      %v621 = vld [vmem:[%s12 + $0x8] sm:$0xf]
      %v622 = vld [vmem:[%s12 + $0xc] sm:$0xf]
      %v623 = vld [vmem:[%s12 + $0x10] sm:$0xf]
      %v624 = vld [vmem:[%s12 + $0x14] sm:$0xf]
      %v625 = vld [vmem:[%s12 + $0x18] sm:$0xf]
      %v626 = vld [vmem:[%s12 + $0x1c] sm:$0xf]
      %v627 = vld [vmem:[%s13] sm:$0x1]
      %v629 = vperm.slane %v627, 0
      %v639 = vunpack.c.l.b16 %v619
      %v640 = vunpack.c.l.b16 %v620
      %v641 = vunpack.c.l.b16 %v621
      %v642 = vunpack.c.l.b16 %v622
      %v643 = vunpack.c.l.b16 %v623
      %v644 = vunpack.c.l.b16 %v624
      %v645 = vunpack.c.l.b16 %v625
      %v646 = vunpack.c.l.b16 %v626
      %v647 = vpack.c.b16 %v640, %v639
      %v648 = vpack.c.b16 %v642, %v641
      %v649 = vpack.c.b16 %v644, %v643
      %v650 = vpack.c.b16 %v646, %v645
      %v656 = vsel %vm385, %v618, 0
      %658 = vmatpush.bf16.msra.mxu0 0
      %659 = vmatpush.bf16.msra.mxu0 0
      %660 = vmatpush.bf16.msra.mxu0 0
      %661 = vmatpush.bf16.msra.mxu0 0
      %662 = vmatpush.bf16.msra.mxu0 %v650
      %663 = vmatpush.bf16.msra.mxu0 %v649
      %664 = vmatpush.bf16.msra.mxu0 %v648
      %665 = vmatpush.bf16.msra.mxu0 %v647
      %666 = vmatmul.bf16.gmra.mxu0 %v656
      %v667 = vpop.f32.mrf.mxu0
      %v668 = vadd.f32 %v629, %v667
      %v669 = vpop.f32.mrf.mxu0
      %670 = vdwg.mxu0
      %v671 = vtanh.pop %v668
      %v672 = vsel %vm303, %v668, %v671
      %673 = vst.msk [vmem:[#allocation3] sm:$0xff] %vm385, %v672
    $region65: #{tpu_custom_call.1} parent=1 // pred_fallthru
      _
    // Predicated region
    $region66: #{tpu_custom_call.1} parent=1 // pred_check
      _
    $region67: #{tpu_custom_call.1} parent=1 // pred_check_branch
      %675 = sbr.rel (0) target = $region69
    $region68: #{tpu_custom_call.1} parent=1 // pred_region
      %677 = vsyncadd [#allocation4], 0
      %s679 = sshll.u32 [#allocation3], 4
      %s680 = int_to_ptr.vmem [resolvable:$true] %s679
      %s681 = sshll.u32 %s14, 4
      %s682 = int_to_ptr.hbm [resolvable:$true] %s681
      %684 = dma.vmem_to_hbm [thread:$0]  %s680, 128, %s682, [#allocation4]
    $region69: #{tpu_custom_call.1} parent=1 // pred_fallthru
      _
    // Predicated region
    $region70: #{tpu_custom_call.1} parent=1 // pred_check
      _
    $region71: #{tpu_custom_call.1} parent=1 // pred_check_branch
      %686 = sbr.rel (0) target = $region73
    $region72: #{tpu_custom_call.1} parent=1 // pred_region
      %688 = dma.done [#allocation4], 128
    $region73: #{tpu_custom_call.1} parent=1 // pred_fallthru
      _
    %689 = vsyncpa [#allocation4], 1

</llo_original>
